<compile_context>
chip_gen: v6e
topology: v6e:2x2x1
jax: 0.10.0
libtpu: 0.0.40
codegen_flags: <defaults>
</compile_context>

<pallas_src>
import functools

import jax
import jax.numpy as jnp
import numpy as np
from jax.experimental import pallas as pl
from jax.experimental.pallas import tpu as pltpu

ETA = 0.2
BETA = 0.2
LANE = 128
SUBLANE = 8
COMPUTE_DTYPE = jnp.bfloat16


def _round_up(x, m):
    return ((x + m - 1) // m) * m


def icm_kernel(x_ref, w_ref, b_ref, out_ref, act1_ref, h1_ref, *,
               n_valid, feat_dim):
    """Whole ICM forward pass on fully VMEM-resident, lane-padded slabs.

    x_ref   : (3*Bp, P) bf16  rows [0:Bp]=obs, [Bp:2Bp]=obs_next,
                              [2Bp:3Bp]=action placed at lanes [F:F+A)
    w_ref   : (4, P, P) bf16  0: wr1 (rows 0:obs_dim, cols 0:F)
                              1: wr2 duplicated at cols {0, P-2F, P-F}
                              2: fused layer-1: wf1 rows 0:F+A  cols 0:F
                                                wi1 rows P-2F:P cols F:3F
                              3: fused layer-2: wf2 rows 0:F    cols 0:F
                                                wi2 rows F:3F   cols F:F+A
    b_ref   : (8, P) f32      0:br1 1:br2(dup) 2:bf1 3:bi1(@F:3F) 4:bf2 5:bi2(@F:F+A)
    out_ref : (Bp+8, P) f32   rows [0:Bp] = eta*LF broadcast across lanes
                              row  Bp     = (loss, loss_forward, loss_inverse)
    act1_ref, h1_ref : (2*Bp, P) f32 scratch (fused-layer activations).
    """
    rows, P = x_ref.shape
    Bp = rows // 3
    F = feat_dim

    def mm(x, w):
        # bf16 MXU matmul, f32 accumulation.
        return jnp.dot(x.astype(COMPUTE_DTYPE), w,
                       preferred_element_type=jnp.float32)

    # --- rep_net applied once to the stacked (obs ; obs_next) rows (2 matmuls)
    xs = x_ref[pl.ds(0, 2 * Bp), :]
    h = jnp.tanh(mm(xs, w_ref[0]) + b_ref[0:1, :])
    # f carries the feature triplicated at lanes [0:F), [P-2F:P-F), [P-F:P).
    f = jnp.tanh(mm(h, w_ref[1]) + b_ref[1:2, :])
    fs = f[0:Bp, :]
    fs_ = f[Bp:2 * Bp, :]
    a = x_ref[pl.ds(2 * Bp, Bp), :].astype(jnp.float32)   # action at [F:F+A)

    # Lane masks selecting the three feature copies (pure VPU, one iota).
    lane = jax.lax.broadcasted_iota(jnp.int32, (Bp, P), 1)
    m0 = (lane < F).astype(jnp.float32)                          # [0:F)
    m1 = ((lane >= P - 2 * F) & (lane < P - F)).astype(jnp.float32)  # [P-2F:P-F)
    m2 = (lane >= P - F).astype(jnp.float32)                     # [P-F:P)

    # --- fused forward/inverse layer 1 (1 matmul) -----------------------------
    # fwd rows: cat(fs, action) in lanes [0:F+A); inv rows: cat(fs, fs_) in
    # lanes [P-2F:P).  Lane ranges are disjoint -> block-diagonal weight.
    act1_ref[pl.ds(0, Bp), :] = fs * m0 + a
    act1_ref[pl.ds(Bp, Bp), :] = fs * m1 + fs_ * m2
    pre1 = mm(act1_ref[...], w_ref[2])
    h1_ref[pl.ds(0, Bp), :] = jnp.tanh(pre1[0:Bp, :] + b_ref[2:3, :])
    h1_ref[pl.ds(Bp, Bp), :] = jnp.tanh(pre1[Bp:2 * Bp, :] + b_ref[3:4, :])

    # --- fused forward/inverse layer 2 (1 matmul) -----------------------------
    out2 = mm(h1_ref[...], w_ref[3])
    s_eval = out2[0:Bp, :] + b_ref[4:5, :]                  # lanes [0:F), NO tanh
    a_eval = jnp.tanh(out2[Bp:2 * Bp, :] + b_ref[5:6, :])   # lanes [F:F+A)

    # Batch-padding mask (only materialized if the wrapper padded the batch).
    valid = None
    if n_valid != Bp:
        ridx = jax.lax.broadcasted_iota(jnp.int32, (Bp, P), 0)
        valid = (ridx < n_valid).astype(jnp.float32)

    # forward loss (m0 keeps only the primary feature copy of fs_)
    diff = (fs_ - s_eval) * m0
    if valid is not None:
        diff = diff * valid
    LF = 0.5 * jnp.sum(diff * diff, axis=-1, keepdims=True)      # (Bp, 1)
    loss_forward = jnp.sum(LF) * (1.0 / n_valid)

    # inverse loss (a_eval and a both live only in lanes [F:F+A))
    d_a = a_eval - a
    if valid is not None:
        d_a = d_a * valid
    loss_inverse = 0.5 * jnp.sum(d_a * d_a) * (1.0 / n_valid)

    loss = (1.0 - BETA) * loss_inverse + BETA * loss_forward

    # --- single lane-dense output slab (one writeback, no masked stores) ------
    # TODO(synk): if B grows into the thousands, pack LF batch-along-lanes
    #             instead of broadcasting across all 128 lanes.
    out_ref[pl.ds(0, Bp), :] = jnp.broadcast_to(ETA * LF, (Bp, P))
    lidx = jax.lax.broadcasted_iota(jnp.int32, (SUBLANE, P), 1)
    out_ref[pl.ds(Bp, SUBLANE), :] = (
        jnp.where(lidx == 0, loss, 0.0)
        + jnp.where(lidx == 1, loss_forward, 0.0)
        + jnp.where(lidx == 2, loss_inverse, 0.0))


def pack_params(params, obs_dim, feat_dim, action_dim):
    """Pack the 14 weight/bias tensors into one bf16 weight slab + one f32 bias
    slab.  Call ONCE at init (and after each optimizer step), NOT per forward."""
    F, A = feat_dim, action_dim
    P = _round_up(max(obs_dim, 3 * F + A, LANE), LANE)
    assert obs_dim <= P and 3 * F + A <= P, "lane-packing layout does not fit"

    def pad(w, r0, c0):
        w = jnp.asarray(w, jnp.float32)
        return (jnp.zeros((P, P), jnp.float32)
                .at[r0:r0 + w.shape[0], c0:c0 + w.shape[1]].set(w))

    def pad_b(b, c0):
        b = jnp.asarray(b, jnp.float32).reshape(-1)
        return jnp.zeros((P,), jnp.float32).at[c0:c0 + b.shape[0]].set(b)

    w0 = pad(params['wr1'], 0, 0)
    # rep layer 2: duplicate wr2 columns so the inverse-branch input layout
    # falls out of the same matmul (no in-kernel lane shuffles needed).
    w1 = (pad(params['wr2'], 0, 0)
          + pad(params['wr2'], 0, P - 2 * F)
          + pad(params['wr2'], 0, P - F))
    # fused layer 1: wf1 block (forward) + wi1 block (inverse), disjoint rows/cols.
    w2 = (pad(params['wf1s'], 0, 0) + pad(params['wf1a'], F, 0)
          + pad(params['wi1a'], P - 2 * F, F) + pad(params['wi1b'], P - F, F))
    # fused layer 2: wf2 -> lanes [0:F) (s_eval), wi2 -> lanes [F:F+A) (a_eval).
    w3 = pad(params['wf2'], 0, 0) + pad(params['wi2'], F, F)
    w_pack = jnp.stack([w0, w1, w2, w3]).astype(COMPUTE_DTYPE)

    b_pack = jnp.stack([
        pad_b(params['br1'], 0),
        pad_b(params['br2'], 0) + pad_b(params['br2'], P - 2 * F)
        + pad_b(params['br2'], P - F),
        pad_b(params['bf1'], 0),
        pad_b(params['bi1'], F),
        pad_b(params['bf2'], 0),
        pad_b(params['bi2'], F),
        jnp.zeros((P,), jnp.float32),
        jnp.zeros((P,), jnp.float32)])
    return w_pack, b_pack


@functools.partial(jax.jit, static_argnames=('feat_dim',))
def curiosity_forward(obs, obs_next, action, w_pack, b_pack, *, feat_dim):
    B, obs_dim = obs.shape
    A = action.shape[-1]
    F = feat_dim
    P = w_pack.shape[-1]
    Bp = _round_up(B, SUBLANE)

    # One lane-dense bf16 data slab; action is pre-placed at lanes [F:F+A) so
    # the fused forward-net layer-1 input cat(fs, action) is just `fs + a`.
    x = jnp.zeros((3 * Bp, P), jnp.float32)
    x = x.at[0:B, :obs_dim].set(obs.astype(jnp.float32))
    x = x.at[Bp:Bp + B, :obs_dim].set(obs_next.astype(jnp.float32))
    x = x.at[2 * Bp:2 * Bp + B, F:F + A].set(action.astype(jnp.float32))
    x = x.astype(COMPUTE_DTYPE)

    vmem = pl.BlockSpec(memory_space=pltpu.MemorySpace.VMEM)
    out = pl.pallas_call(
        functools.partial(icm_kernel, n_valid=B, feat_dim=F),
        out_shape=jax.ShapeDtypeStruct((Bp + SUBLANE, P), jnp.float32),
        in_specs=[vmem, vmem, vmem],
        out_specs=vmem,
        scratch_shapes=[pltpu.VMEM((2 * Bp, P), jnp.float32),
                        pltpu.VMEM((2 * Bp, P), jnp.float32)],
    )(x, w_pack, b_pack)
    # TODO(synk): if B grows large, add a batch grid (BlockSpec over the x-slab
    #             rows, weights resident via index_map -> (0,0,0)) with
    #             dimension_semantics=("parallel",) so v7x's second TensorCore
    #             shares the work, sized for its 64 MiB VMEM.

    intrinsic_reward = out[:B, :1]                      # (B, 1) = eta * LF
    summaries = {'LOSS/curiosity_loss': out[Bp, 0],
                 'LOSS/forward_loss': out[Bp, 1],
                 'LOSS/inverse_loss': out[Bp, 2]}
    return intrinsic_reward, summaries


def curiosity_forward_ref(obs, obs_next, action, p):
    """Pure-JAX f32 reference of the same forward pass (for correctness check)."""
    def rep(x):
        h = jnp.tanh(x @ p['wr1'] + p['br1'])
        return jnp.tanh(h @ p['wr2'] + p['br2'])
    fs, fs_ = rep(obs), rep(obs_next)
    h_f = jnp.tanh(fs @ p['wf1s'] + action @ p['wf1a'] + p['bf1'])
    s_eval = h_f @ p['wf2'] + p['bf2']
    LF = 0.5 * jnp.sum((fs_ - s_eval) ** 2, axis=-1, keepdims=True)
    loss_forward = jnp.mean(LF)
    h_i = jnp.tanh(fs @ p['wi1a'] + fs_ @ p['wi1b'] + p['bi1'])
    a_eval = jnp.tanh(h_i @ p['wi2'] + p['bi2'])
    loss_inverse = 0.5 * jnp.mean(jnp.sum((a_eval - action) ** 2, axis=-1))
    loss = (1.0 - BETA) * loss_inverse + BETA * loss_forward
    return ETA * LF, loss, loss_forward, loss_inverse


def init_params(key, obs_dim, feat_dim, action_dim):
    ks = jax.random.split(key, 6)

    def lin(k, fan_in, fan_out):
        bound = 1.0 / (fan_in ** 0.5)
        kw, kb = jax.random.split(k)
        w = jax.random.uniform(kw, (fan_in, fan_out), jnp.float32, -bound, bound)
        b = jax.random.uniform(kb, (1, fan_out), jnp.float32, -bound, bound)
        return w, b

    wr1, br1 = lin(ks[0], obs_dim, feat_dim)                 # rep_net layer 1
    wr2, br2 = lin(ks[1], feat_dim, feat_dim)                # rep_net layer 2
    wf1, bf1 = lin(ks[2], feat_dim + action_dim, feat_dim)   # forward_net l1
    wf2, bf2 = lin(ks[3], feat_dim, feat_dim)                # forward_net l2
    wi1, bi1 = lin(ks[4], 2 * feat_dim, 2 * feat_dim)        # inverse l1
    wi2, bi2 = lin(ks[5], 2 * feat_dim, action_dim)          # inverse l2

    return dict(
        wr1=wr1, br1=br1, wr2=wr2, br2=br2,
        # split cat(fs, action) @ wf1 into fs @ wf1[:F] + action @ wf1[F:]
        wf1s=wf1[:feat_dim], wf1a=wf1[feat_dim:], bf1=bf1, wf2=wf2, bf2=bf2,
        # split cat(fs, fs_) @ wi1 into fs @ wi1[:F] + fs_ @ wi1[F:]
        wi1a=wi1[:feat_dim], wi1b=wi1[feat_dim:], bi1=bi1, wi2=wi2, bi2=bi2,
    )


if __name__ == "__main__":
    B, OBS_DIM, FEAT_DIM, ACTION_DIM = 8, 16, 32, 8

    key = jax.random.PRNGKey(0)
    k_obs, k_obs2, k_act, k_params = jax.random.split(key, 4)

    obs = jax.random.normal(k_obs, (B, OBS_DIM), jnp.float32)
    obs_next = jax.random.normal(k_obs2, (B, OBS_DIM), jnp.float32)
    action = jnp.tanh(jax.random.normal(k_act, (B, ACTION_DIM), jnp.float32))

    params = init_params(k_params, OBS_DIM, FEAT_DIM, ACTION_DIM)

    # Pack the weight/bias slabs ONCE (hoisted out of the per-step path; in a
    # training loop this is redone only after each optimizer step).
    w_pack, b_pack = pack_params(params, OBS_DIM, FEAT_DIM, ACTION_DIM)

    intrinsic, summaries = curiosity_forward(obs, obs_next, action,
                                             w_pack, b_pack, feat_dim=FEAT_DIM)
    jax.block_until_ready((intrinsic, summaries))
    assert intrinsic.shape == (B, 1)

    # Correctness check vs a pure-JAX f32 reference.  Tolerance is loose enough
    # for the kernel's bf16 matmuls (f32 accumulation) but catches any
    # structural / lane-packing bug (which would produce O(1) errors).
    ri, rl, rlf, rli = curiosity_forward_ref(obs, obs_next, action, params)
    np.testing.assert_allclose(np.asarray(intrinsic), np.asarray(ri),
                               rtol=5e-2, atol=5e-2)
    np.testing.assert_allclose(float(summaries['LOSS/curiosity_loss']), float(rl),
                               rtol=5e-2, atol=5e-2)
    np.testing.assert_allclose(float(summaries['LOSS/forward_loss']), float(rlf),
                               rtol=5e-2, atol=5e-2)
    np.testing.assert_allclose(float(summaries['LOSS/inverse_loss']), float(rli),
                               rtol=5e-2, atol=5e-2)

    print("KERNEL_OK")
</pallas_src>

<mosaic_0001>
module attributes {stable_mosaic.version = 11 : i64} {
  func.func @icm_kernel(%arg0: memref<24x128xbf16, #tpu.memory_space<vmem>>, %arg1: memref<4x128x128xbf16, #tpu.memory_space<vmem>>, %arg2: memref<8x128xf32, #tpu.memory_space<vmem>>, %arg3: memref<16x128xf32, #tpu.memory_space<vmem>>, %arg4: memref<16x128xf32, #tpu.memory_space<vmem>>, %arg5: memref<16x128xf32, #tpu.memory_space<vmem>>) attributes {dimension_semantics = [], scalar_prefetch = 0 : i64, scratch_operands = 2 : i64, tpu.core_type = #tpu.core_type<tc>} {
    %c0 = arith.constant 0 : index
    %c0_0 = arith.constant 0 : index
    %0 = vector.load %arg0[%c0, %c0_0] : memref<24x128xbf16, #tpu.memory_space<vmem>>, vector<16x128xbf16>
    %c0_1 = arith.constant 0 : index
    %c0_2 = arith.constant 0 : index
    %c0_3 = arith.constant 0 : index
    %1 = vector.load %arg1[%c0_1, %c0_2, %c0_3] : memref<4x128x128xbf16, #tpu.memory_space<vmem>>, vector<1x128x128xbf16>
    %2 = vector.shape_cast %1 : vector<1x128x128xbf16> to vector<128x128xbf16>
    %cst = arith.constant dense<0.000000e+00> : vector<16x128xf32>
    %3 = tpu.matmul %0, %2, %cst {dimension_numbers = #tpu.dot_dimension_numbers<[1], [0], [0], [1], [0, 0, 1, 1], [], []>} : vector<16x128xbf16>, vector<128x128xbf16>, vector<16x128xf32> -> vector<16x128xf32>
    %c0_4 = arith.constant 0 : index
    %c0_5 = arith.constant 0 : index
    %4 = vector.load %arg2[%c0_4, %c0_5] : memref<8x128xf32, #tpu.memory_space<vmem>>, vector<1x128xf32>
    %5 = vector.broadcast %4 : vector<1x128xf32> to vector<16x128xf32>
    %6 = arith.addf %3, %5 : vector<16x128xf32>
    %7 = math.tanh %6 : vector<16x128xf32>
    %c1 = arith.constant 1 : index
    %c0_6 = arith.constant 0 : index
    %c0_7 = arith.constant 0 : index
    %8 = vector.load %arg1[%c1, %c0_6, %c0_7] : memref<4x128x128xbf16, #tpu.memory_space<vmem>>, vector<1x128x128xbf16>
    %9 = vector.shape_cast %8 : vector<1x128x128xbf16> to vector<128x128xbf16>
    %10 = arith.truncf %7 : vector<16x128xf32> to vector<16x128xbf16>
    %cst_8 = arith.constant dense<0.000000e+00> : vector<16x128xf32>
    %11 = tpu.matmul %10, %9, %cst_8 {dimension_numbers = #tpu.dot_dimension_numbers<[1], [0], [0], [1], [0, 0, 1, 1], [], []>} : vector<16x128xbf16>, vector<128x128xbf16>, vector<16x128xf32> -> vector<16x128xf32>
    %c1_9 = arith.constant 1 : index
    %c0_10 = arith.constant 0 : index
    %12 = vector.load %arg2[%c1_9, %c0_10] : memref<8x128xf32, #tpu.memory_space<vmem>>, vector<1x128xf32>
    %13 = vector.broadcast %12 : vector<1x128xf32> to vector<16x128xf32>
    %14 = arith.addf %11, %13 : vector<16x128xf32>
    %15 = math.tanh %14 : vector<16x128xf32>
    %16 = vector.extract_strided_slice %15 {offsets = [0, 0], sizes = [8, 128], strides = [1, 1]} : vector<16x128xf32> to vector<8x128xf32>
    %17 = vector.extract_strided_slice %15 {offsets = [8, 0], sizes = [8, 128], strides = [1, 1]} : vector<16x128xf32> to vector<8x128xf32>
    %c16 = arith.constant 16 : index
    %c0_11 = arith.constant 0 : index
    %18 = vector.load %arg0[%c16, %c0_11] : memref<24x128xbf16, #tpu.memory_space<vmem>>, vector<8x128xbf16>
    %19 = arith.extf %18 : vector<8x128xbf16> to vector<8x128xf32>
    %20 = tpu.iota {dimensions = array<i32: 1>} : vector<8x128xi32>
    %c32_i32 = arith.constant 32 : i32
    %21 = vector.broadcast %c32_i32 : i32 to vector<8x128xi32>
    %22 = arith.cmpi slt, %20, %21 : vector<8x128xi32>
    %23 = arith.extui %22 : vector<8x128xi1> to vector<8x128xi32>
    %24 = arith.sitofp %23 : vector<8x128xi32> to vector<8x128xf32>
    %c64_i32 = arith.constant 64 : i32
    %25 = vector.broadcast %c64_i32 : i32 to vector<8x128xi32>
    %26 = arith.cmpi sge, %20, %25 : vector<8x128xi32>
    %c96_i32 = arith.constant 96 : i32
    %27 = vector.broadcast %c96_i32 : i32 to vector<8x128xi32>
    %28 = arith.cmpi slt, %20, %27 : vector<8x128xi32>
    %29 = arith.andi %26, %28 : vector<8x128xi1>
    %30 = arith.extui %29 : vector<8x128xi1> to vector<8x128xi32>
    %31 = arith.sitofp %30 : vector<8x128xi32> to vector<8x128xf32>
    %c96_i32_12 = arith.constant 96 : i32
    %32 = vector.broadcast %c96_i32_12 : i32 to vector<8x128xi32>
    %33 = arith.cmpi sge, %20, %32 : vector<8x128xi32>
    %34 = arith.extui %33 : vector<8x128xi1> to vector<8x128xi32>
    %35 = arith.sitofp %34 : vector<8x128xi32> to vector<8x128xf32>
    %36 = arith.mulf %16, %24 : vector<8x128xf32>
    %37 = arith.addf %36, %19 : vector<8x128xf32>
    %c0_13 = arith.constant 0 : index
    %c0_14 = arith.constant 0 : index
    %38 = vector.load %arg4[%c0_13, %c0_14] : memref<16x128xf32, #tpu.memory_space<vmem>>, vector<8x128xf32>
    tpu.vector_store %arg4[%c0_13, %c0_14], %37 {strides = array<i32>} : memref<16x128xf32, #tpu.memory_space<vmem>>, vector<8x128xf32>,
    %39 = arith.mulf %16, %31 : vector<8x128xf32>
    %40 = arith.mulf %17, %35 : vector<8x128xf32>
    %41 = arith.addf %39, %40 : vector<8x128xf32>
    %c8 = arith.constant 8 : index
    %c0_15 = arith.constant 0 : index
    %42 = vector.load %arg4[%c8, %c0_15] : memref<16x128xf32, #tpu.memory_space<vmem>>, vector<8x128xf32>
    tpu.vector_store %arg4[%c8, %c0_15], %41 {strides = array<i32>} : memref<16x128xf32, #tpu.memory_space<vmem>>, vector<8x128xf32>,
    %c0_16 = arith.constant 0 : index
    %c0_17 = arith.constant 0 : index
    %43 = vector.load %arg4[%c0_16, %c0_17] : memref<16x128xf32, #tpu.memory_space<vmem>>, vector<16x128xf32>
    %c2 = arith.constant 2 : index
    %c0_18 = arith.constant 0 : index
    %c0_19 = arith.constant 0 : index
    %44 = vector.load %arg1[%c2, %c0_18, %c0_19] : memref<4x128x128xbf16, #tpu.memory_space<vmem>>, vector<1x128x128xbf16>
    %45 = vector.shape_cast %44 : vector<1x128x128xbf16> to vector<128x128xbf16>
    %46 = arith.truncf %43 : vector<16x128xf32> to vector<16x128xbf16>
    %cst_20 = arith.constant dense<0.000000e+00> : vector<16x128xf32>
    %47 = tpu.matmul %46, %45, %cst_20 {dimension_numbers = #tpu.dot_dimension_numbers<[1], [0], [0], [1], [0, 0, 1, 1], [], []>} : vector<16x128xbf16>, vector<128x128xbf16>, vector<16x128xf32> -> vector<16x128xf32>
    %48 = vector.extract_strided_slice %47 {offsets = [0, 0], sizes = [8, 128], strides = [1, 1]} : vector<16x128xf32> to vector<8x128xf32>
    %c2_21 = arith.constant 2 : index
    %c0_22 = arith.constant 0 : index
    %49 = vector.load %arg2[%c2_21, %c0_22] : memref<8x128xf32, #tpu.memory_space<vmem>>, vector<1x128xf32>
    %50 = vector.broadcast %49 : vector<1x128xf32> to vector<8x128xf32>
    %51 = arith.addf %48, %50 : vector<8x128xf32>
    %52 = math.tanh %51 : vector<8x128xf32>
    %c0_23 = arith.constant 0 : index
    %c0_24 = arith.constant 0 : index
    %53 = vector.load %arg5[%c0_23, %c0_24] : memref<16x128xf32, #tpu.memory_space<vmem>>, vector<8x128xf32>
    tpu.vector_store %arg5[%c0_23, %c0_24], %52 {strides = array<i32>} : memref<16x128xf32, #tpu.memory_space<vmem>>, vector<8x128xf32>,
    %54 = vector.extract_strided_slice %47 {offsets = [8, 0], sizes = [8, 128], strides = [1, 1]} : vector<16x128xf32> to vector<8x128xf32>
    %c3 = arith.constant 3 : index
    %c0_25 = arith.constant 0 : index
    %55 = vector.load %arg2[%c3, %c0_25] : memref<8x128xf32, #tpu.memory_space<vmem>>, vector<1x128xf32>
    %56 = vector.broadcast %55 : vector<1x128xf32> to vector<8x128xf32>
    %57 = arith.addf %54, %56 : vector<8x128xf32>
    %58 = math.tanh %57 : vector<8x128xf32>
    %c8_26 = arith.constant 8 : index
    %c0_27 = arith.constant 0 : index
    %59 = vector.load %arg5[%c8_26, %c0_27] : memref<16x128xf32, #tpu.memory_space<vmem>>, vector<8x128xf32>
    tpu.vector_store %arg5[%c8_26, %c0_27], %58 {strides = array<i32>} : memref<16x128xf32, #tpu.memory_space<vmem>>, vector<8x128xf32>,
    %c0_28 = arith.constant 0 : index
    %c0_29 = arith.constant 0 : index
    %60 = vector.load %arg5[%c0_28, %c0_29] : memref<16x128xf32, #tpu.memory_space<vmem>>, vector<16x128xf32>
    %c3_30 = arith.constant 3 : index
    %c0_31 = arith.constant 0 : index
    %c0_32 = arith.constant 0 : index
    %61 = vector.load %arg1[%c3_30, %c0_31, %c0_32] : memref<4x128x128xbf16, #tpu.memory_space<vmem>>, vector<1x128x128xbf16>
    %62 = vector.shape_cast %61 : vector<1x128x128xbf16> to vector<128x128xbf16>
    %63 = arith.truncf %60 : vector<16x128xf32> to vector<16x128xbf16>
    %cst_33 = arith.constant dense<0.000000e+00> : vector<16x128xf32>
    %64 = tpu.matmul %63, %62, %cst_33 {dimension_numbers = #tpu.dot_dimension_numbers<[1], [0], [0], [1], [0, 0, 1, 1], [], []>} : vector<16x128xbf16>, vector<128x128xbf16>, vector<16x128xf32> -> vector<16x128xf32>
    %65 = vector.extract_strided_slice %64 {offsets = [0, 0], sizes = [8, 128], strides = [1, 1]} : vector<16x128xf32> to vector<8x128xf32>
    %c4 = arith.constant 4 : index
    %c0_34 = arith.constant 0 : index
    %66 = vector.load %arg2[%c4, %c0_34] : memref<8x128xf32, #tpu.memory_space<vmem>>, vector<1x128xf32>
    %67 = vector.broadcast %66 : vector<1x128xf32> to vector<8x128xf32>
    %68 = arith.addf %65, %67 : vector<8x128xf32>
    %69 = vector.extract_strided_slice %64 {offsets = [8, 0], sizes = [8, 128], strides = [1, 1]} : vector<16x128xf32> to vector<8x128xf32>
    %c5 = arith.constant 5 : index
    %c0_35 = arith.constant 0 : index
    %70 = vector.load %arg2[%c5, %c0_35] : memref<8x128xf32, #tpu.memory_space<vmem>>, vector<1x128xf32>
    %71 = vector.broadcast %70 : vector<1x128xf32> to vector<8x128xf32>
    %72 = arith.addf %69, %71 : vector<8x128xf32>
    %73 = math.tanh %72 : vector<8x128xf32>
    %74 = arith.subf %17, %68 : vector<8x128xf32>
    %75 = arith.mulf %74, %24 : vector<8x128xf32>
    %76 = arith.mulf %75, %75 : vector<8x128xf32>
    %cst_36 = arith.constant dense<0.000000e+00> : vector<8xf32>
    %77 = vector.multi_reduction <add>, %76, %cst_36 [1] : vector<8x128xf32> to vector<8xf32>
    %78 = vector.shape_cast %77 : vector<8xf32> to vector<8x1xf32>
    %cst_37 = arith.constant 5.000000e-01 : f32
    %79 = vector.broadcast %cst_37 : f32 to vector<8x1xf32>
    %80 = arith.mulf %79, %78 : vector<8x1xf32>
    %81 = vector.shape_cast %80 : vector<8x1xf32> to vector<1x8x1xf32>
    %cst_38 = arith.constant dense<0.000000e+00> : vector<1xf32>
    %82 = vector.multi_reduction <add>, %81, %cst_38 [1, 2] : vector<1x8x1xf32> to vector<1xf32>
    %83 = vector.shape_cast %82 : vector<1xf32> to vector<1x1x1xf32>
    %84 = vector.extract %83[0, 0, 0] : f32 from vector<1x1x1xf32>
    %cst_39 = arith.constant 1.250000e-01 : f32
    %85 = arith.mulf %84, %cst_39 : f32
    %86 = arith.subf %73, %19 : vector<8x128xf32>
    %87 = arith.mulf %86, %86 : vector<8x128xf32>
    %88 = vector.shape_cast %87 : vector<8x128xf32> to vector<1x8x128xf32>
    %cst_40 = arith.constant dense<0.000000e+00> : vector<1xf32>
    %89 = vector.multi_reduction <add>, %88, %cst_40 [1, 2] : vector<1x8x128xf32> to vector<1xf32>
    %90 = vector.shape_cast %89 : vector<1xf32> to vector<1x1x1xf32>
    %91 = vector.extract %90[0, 0, 0] : f32 from vector<1x1x1xf32>
    %cst_41 = arith.constant 5.000000e-01 : f32
    %92 = arith.mulf %cst_41, %91 : f32
    %cst_42 = arith.constant 1.250000e-01 : f32
    %93 = arith.mulf %92, %cst_42 : f32
    %cst_43 = arith.constant 8.000000e-01 : f32
    %94 = arith.mulf %cst_43, %93 : f32
    %cst_44 = arith.constant 2.000000e-01 : f32
    %95 = arith.mulf %cst_44, %85 : f32
    %96 = arith.addf %94, %95 : f32
    %cst_45 = arith.constant 2.000000e-01 : f32
    %97 = vector.broadcast %cst_45 : f32 to vector<8x1xf32>
    %98 = arith.mulf %97, %80 : vector<8x1xf32>
    %99 = vector.shape_cast %98 : vector<8x1xf32> to vector<8x1xf32>
    %100 = vector.broadcast %99 : vector<8x1xf32> to vector<8x128xf32>
    %c0_46 = arith.constant 0 : index
    %c0_47 = arith.constant 0 : index
    %101 = vector.load %arg3[%c0_46, %c0_47] : memref<16x128xf32, #tpu.memory_space<vmem>>, vector<8x128xf32>
    tpu.vector_store %arg3[%c0_46, %c0_47], %100 {strides = array<i32>} : memref<16x128xf32, #tpu.memory_space<vmem>>, vector<8x128xf32>,
    %102 = tpu.iota {dimensions = array<i32: 1>} : vector<8x128xi32>
    %c0_i32 = arith.constant 0 : i32
    %103 = vector.broadcast %c0_i32 : i32 to vector<8x128xi32>
    %104 = arith.cmpi eq, %102, %103 : vector<8x128xi32>
    %cst_48 = arith.constant 0.000000e+00 : f32
    %105 = vector.broadcast %96 : f32 to vector<8x128xf32>
    %106 = vector.broadcast %cst_48 : f32 to vector<8x128xf32>
    %107 = arith.select %104, %105, %106 : vector<8x128xi1>, vector<8x128xf32>
    %c1_i32 = arith.constant 1 : i32
    %108 = vector.broadcast %c1_i32 : i32 to vector<8x128xi32>
    %109 = arith.cmpi eq, %102, %108 : vector<8x128xi32>
    %cst_49 = arith.constant 0.000000e+00 : f32
    %110 = vector.broadcast %85 : f32 to vector<8x128xf32>
    %111 = vector.broadcast %cst_49 : f32 to vector<8x128xf32>
    %112 = arith.select %109, %110, %111 : vector<8x128xi1>, vector<8x128xf32>
    %113 = arith.addf %107, %112 : vector<8x128xf32>
    %c2_i32 = arith.constant 2 : i32
    %114 = vector.broadcast %c2_i32 : i32 to vector<8x128xi32>
    %115 = arith.cmpi eq, %102, %114 : vector<8x128xi32>
    %cst_50 = arith.constant 0.000000e+00 : f32
    %116 = vector.broadcast %93 : f32 to vector<8x128xf32>
    %117 = vector.broadcast %cst_50 : f32 to vector<8x128xf32>
    %118 = arith.select %115, %116, %117 : vector<8x128xi1>, vector<8x128xf32>
    %119 = arith.addf %113, %118 : vector<8x128xf32>
    %c8_51 = arith.constant 8 : index
    %c0_52 = arith.constant 0 : index
    %120 = vector.load %arg3[%c8_51, %c0_52] : memref<16x128xf32, #tpu.memory_space<vmem>>, vector<8x128xf32>
    tpu.vector_store %arg3[%c8_51, %c0_52], %119 {strides = array<i32>} : memref<16x128xf32, #tpu.memory_space<vmem>>, vector<8x128xf32>,
    return
  }
}

</mosaic_0001>

<llo_original>
// kernel: curiosity_forward.1
$region0: #{curiosity_forward.1}
  #allocation0 [shape = 'u32[]', space=smem, size = 0x4, offset = 0x4, fixed_abs, tag = 'smem constant byte address 0x4 - core index']
  #allocation1 [shape = 'u32[144,128]{1,0:T(1,128)}', space=vmem, size = 0x12000, scoped, tag = 'internal scratch']
  #allocation2 [shape = 'f32[16,128]{1,0:T(8,128)}', space=vmem, size = 0x2000, scoped, tag = 'scratch operand']
  #allocation3 [shape = 'f32[16,128]{1,0:T(8,128)}', space=vmem, size = 0x2000, scoped, tag = 'scratch operand']
  %s0 = inlined_call_operand.vmem [shape: bf16[24,128], index: 0, kind: input, shape index: {}]
  %s1 = inlined_call_operand.hbm [shape: bf16[4,128,128], index: 1, kind: input, shape index: {}]
  %s2 = inlined_call_operand.vmem [shape: f32[8,128], index: 2, kind: input, shape index: {}]
  %s3 = inlined_call_operand.vmem [shape: f32[16,128], index: 3, kind: output, shape index: {}]
  %s4 = sld [smem:[#allocation0]]
  $region26: #{curiosity_forward.1} parent=0
    _
  %s6 = ssub.s32 1, %s4
  %s7 = scalar_select 0, %s6, %s4
  $region1: #{curiosity_forward.1} parent=0
    #allocation4 [shape = 'u8[131072]{0}', space=vmem, size = 0x20000, scoped, tag = 'input window, operand 1, single buffered']
    #allocation5 [shape = 's32[1]{0}', space=sflag, size = 0x4, scoped, tag = 'scoped memory for curiosity_forward.1']
    %8 = vsyncpa [#allocation5], 0
    // Predicated region
    $region2: #{curiosity_forward.1} parent=1 // pred_check
      _
    $region3: #{curiosity_forward.1} parent=1 // pred_check_branch
      %10 = sbr.rel (0) target = $region5
    $region4: #{curiosity_forward.1} parent=1 // pred_region
      _
    $region5: #{curiosity_forward.1} parent=1 // pred_fallthru
      _
    // Predicated region
    $region6: #{curiosity_forward.1} parent=1 // pred_check
      _
    $region7: #{curiosity_forward.1} parent=1 // pred_check_branch
      %12 = sbr.rel (0) target = $region9
    $region8: #{curiosity_forward.1} parent=1 // pred_region
      %s14 = ssub.s32 4096, 4096
      %15 = vsyncadd [#allocation5], %s14
      %s16 = sshll.u32 [#allocation4], 4
      %s17 = int_to_ptr.vmem [resolvable:$true] %s16
      %22 = dma.hbm_to_vmem [thread:$0]  %s1, 4096, %s17, [#allocation5], 64, 64, 4
    $region9: #{curiosity_forward.1} parent=1 // pred_fallthru
      _
    // Predicated region
    $region10: #{curiosity_forward.1} parent=1 // pred_check
      _
    $region11: #{curiosity_forward.1} parent=1 // pred_check_branch
      %24 = sbr.rel (0) target = $region13
    $region12: #{curiosity_forward.1} parent=1 // pred_region
      _
    $region13: #{curiosity_forward.1} parent=1 // pred_fallthru
      _
    // Predicated region
    $region14: #{curiosity_forward.1} parent=1 // pred_check
      _
    $region15: #{curiosity_forward.1} parent=1 // pred_check_branch
      %26 = sbr.rel (0) target = $region17
    $region16: #{curiosity_forward.1} parent=1 // pred_region
      %27 = dma.done [#allocation5], 4096
    $region17: #{curiosity_forward.1} parent=1 // pred_fallthru
      _
    %v29 = vld [vmem:[%s0] sm:$0xf]
    %v30 = vld [vmem:[%s0 + $0x4] sm:$0xf]
    %v31 = vld [vmem:[#allocation4] sm:$0xf]
    %v32 = vld [vmem:[#allocation4 + $0x4] sm:$0xf]
    %v33 = vld [vmem:[#allocation4 + $0x8] sm:$0xf]
    %v34 = vld [vmem:[#allocation4 + $0xc] sm:$0xf]
    %v35 = vld [vmem:[#allocation4 + $0x10] sm:$0xf]
    %v36 = vld [vmem:[#allocation4 + $0x14] sm:$0xf]
    %v37 = vld [vmem:[#allocation4 + $0x18] sm:$0xf]
    %v38 = vld [vmem:[#allocation4 + $0x1c] sm:$0xf]
    %v39 = vld [vmem:[#allocation4 + $0x20] sm:$0xf]
    %v40 = vld [vmem:[#allocation4 + $0x24] sm:$0xf]
    %v41 = vld [vmem:[#allocation4 + $0x28] sm:$0xf]
    %v42 = vld [vmem:[#allocation4 + $0x2c] sm:$0xf]
    %v43 = vld [vmem:[#allocation4 + $0x30] sm:$0xf]
    %v44 = vld [vmem:[#allocation4 + $0x34] sm:$0xf]
    %v45 = vld [vmem:[#allocation4 + $0x38] sm:$0xf]
    %v46 = vld [vmem:[#allocation4 + $0x3c] sm:$0xf]
    %v47 = vld [vmem:[%s2] sm:$0x1]
    %v48 = vlaneseq
    %v49 = vshrl.u32 %v48, 7
    %v50 = vsub.s32 0, %v49
    %v51 = vrot.slane %v47, %v50
    %v54 = vunpack.c.l.b16 %v29
    %v55 = vunpack.c.l.b16 %v30
    %v56 = vpack.c.b16 %v55, %v54
    %v74 = vunpack.c.l.b16 %v31
    %v75 = vunpack.c.l.b16 %v32
    %v76 = vunpack.c.l.b16 %v33
    %v77 = vunpack.c.l.b16 %v34
    %v78 = vunpack.c.l.b16 %v35
    %v79 = vunpack.c.l.b16 %v36
    %v80 = vunpack.c.l.b16 %v37
    %v81 = vunpack.c.l.b16 %v38
    %v82 = vunpack.c.l.b16 %v39
    %v83 = vunpack.c.l.b16 %v40
    %v84 = vunpack.c.l.b16 %v41
    %v85 = vunpack.c.l.b16 %v42
    %v86 = vunpack.c.l.b16 %v43
    %v87 = vunpack.c.l.b16 %v44
    %v88 = vunpack.c.l.b16 %v45
    %v89 = vunpack.c.l.b16 %v46
    %v90 = vpack.c.b16 %v75, %v74
    %v91 = vpack.c.b16 %v77, %v76
    %v92 = vpack.c.b16 %v79, %v78
    %v93 = vpack.c.b16 %v81, %v80
    %v94 = vpack.c.b16 %v83, %v82
    %v95 = vpack.c.b16 %v85, %v84
    %v96 = vpack.c.b16 %v87, %v86
    %v97 = vpack.c.b16 %v89, %v88
    %106 = vmatprep.subr.bf16.mxu0 0
    %107 = vmatpush1.bf16.msra.mxu0 %v97
    %108 = vmatprep.subr.bf16.mxu0 0
    %109 = vmatpush1.bf16.msra.mxu0 %v96
    %110 = vmatprep.subr.bf16.mxu0 0
    %111 = vmatpush1.bf16.msra.mxu0 %v95
    %112 = vmatprep.subr.bf16.mxu0 0
    %113 = vmatpush1.bf16.msra.mxu0 %v94
    %114 = vmatprep.subr.bf16.mxu0 0
    %115 = vmatpush1.bf16.msra.mxu0 %v93
    %116 = vmatprep.subr.bf16.mxu0 0
    %117 = vmatpush1.bf16.msra.mxu0 %v92
    %118 = vmatprep.subr.bf16.mxu0 0
    %119 = vmatpush1.bf16.msra.mxu0 %v91
    %120 = vmatprep.subr.bf16.mxu0 0
    %121 = vmatpush1.bf16.msra.mxu0 %v90
    %122 = vmatprep.subr.bf16.mxu0 0
    %123 = vmatpush2.bf16.msra.mxu0 0
    %124 = vmatprep.subr.bf16.mxu0 0
    %125 = vmatpush2.bf16.msra.mxu0 0
    %126 = vmatprep.subr.bf16.mxu0 0
    %127 = vmatpush2.bf16.msra.mxu0 0
    %128 = vmatprep.subr.bf16.mxu0 0
    %129 = vmatpush2.bf16.msra.mxu0 0
    %130 = vmatprep.subr.bf16.mxu0 0
    %131 = vmatpush2.bf16.msra.mxu0 0
    %132 = vmatprep.subr.bf16.mxu0 0
    %133 = vmatpush2.bf16.msra.mxu0 0
    %134 = vmatprep.subr.bf16.mxu0 0
    %135 = vmatpush2.bf16.msra.mxu0 0
    %136 = vmatprep.subr.bf16.mxu0 0
    %137 = vmatpush2.bf16.msra.mxu0 0
    %138 = vmatprep.mubr.bf16.mxu0 0
    %139 = vmatmul.mubr.bf16.gmra.mxu0 %v56
    %v140 = vpop.f32.mrf.mxu0
    %v141 = vadd.f32 %v51, %v140
    %v142 = vpop.f32.mrf.mxu0
    %v143 = vpop.f32.mrf.mxu0
    %v144 = vadd.f32 %v51, %v143
    %v145 = vpop.f32.mrf.mxu0
    %146 = vdwg.mxu0
    %v147 = vtanh.pop %v141
    %v148 = vtanh.pop %v144
    %s149 = scalar_lea.vmem [#allocation4], 64
    %v150 = vld [vmem:[%s149] sm:$0xf]
    %v151 = vld [vmem:[%s149 + $0x4] sm:$0xf]
    %v152 = vld [vmem:[%s149 + $0x8] sm:$0xf]
    %v153 = vld [vmem:[%s149 + $0xc] sm:$0xf]
    %v154 = vld [vmem:[%s149 + $0x10] sm:$0xf]
    %v155 = vld [vmem:[%s149 + $0x14] sm:$0xf]
    %v156 = vld [vmem:[%s149 + $0x18] sm:$0xf]
    %v157 = vld [vmem:[%s149 + $0x1c] sm:$0xf]
    %v158 = vld [vmem:[%s149 + $0x20] sm:$0xf]
    %v159 = vld [vmem:[%s149 + $0x24] sm:$0xf]
    %v160 = vld [vmem:[%s149 + $0x28] sm:$0xf]
    %v161 = vld [vmem:[%s149 + $0x2c] sm:$0xf]
    %v162 = vld [vmem:[%s149 + $0x30] sm:$0xf]
    %v163 = vld [vmem:[%s149 + $0x34] sm:$0xf]
    %v164 = vld [vmem:[%s149 + $0x38] sm:$0xf]
    %v165 = vld [vmem:[%s149 + $0x3c] sm:$0xf]
    %v166 = vpack.c.bf16 %v148, %v147
    %v167 = vld [vmem:[%s2 + $0x1] sm:$0x1]
    %v168 = vlaneseq
    %v169 = vshrl.u32 %v168, 7
    %v170 = vsub.s32 0, %v169
    %v171 = vrot.slane %v167, %v170
    %v188 = vunpack.c.l.b16 %v150
    %v189 = vunpack.c.l.b16 %v151
    %v190 = vunpack.c.l.b16 %v152
    %v191 = vunpack.c.l.b16 %v153
    %v192 = vunpack.c.l.b16 %v154
    %v193 = vunpack.c.l.b16 %v155
    %v194 = vunpack.c.l.b16 %v156
    %v195 = vunpack.c.l.b16 %v157
    %v196 = vunpack.c.l.b16 %v158
    %v197 = vunpack.c.l.b16 %v159
    %v198 = vunpack.c.l.b16 %v160
    %v199 = vunpack.c.l.b16 %v161
    %v200 = vunpack.c.l.b16 %v162
    %v201 = vunpack.c.l.b16 %v163
    %v202 = vunpack.c.l.b16 %v164
    %v203 = vunpack.c.l.b16 %v165
    %v204 = vpack.c.b16 %v189, %v188
    %v205 = vpack.c.b16 %v191, %v190
    %v206 = vpack.c.b16 %v193, %v192
    %v207 = vpack.c.b16 %v195, %v194
    %v208 = vpack.c.b16 %v197, %v196
    %v209 = vpack.c.b16 %v199, %v198
    %v210 = vpack.c.b16 %v201, %v200
    %v211 = vpack.c.b16 %v203, %v202
    %220 = vmatprep.subr.bf16.mxu0 0
    %221 = vmatpush1.bf16.msra.mxu0 %v211
    %222 = vmatprep.subr.bf16.mxu0 0
    %223 = vmatpush1.bf16.msra.mxu0 %v210
    %224 = vmatprep.subr.bf16.mxu0 0
    %225 = vmatpush1.bf16.msra.mxu0 %v209
    %226 = vmatprep.subr.bf16.mxu0 0
    %227 = vmatpush1.bf16.msra.mxu0 %v208
    %228 = vmatprep.subr.bf16.mxu0 0
    %229 = vmatpush1.bf16.msra.mxu0 %v207
    %230 = vmatprep.subr.bf16.mxu0 0
    %231 = vmatpush1.bf16.msra.mxu0 %v206
    %232 = vmatprep.subr.bf16.mxu0 0
    %233 = vmatpush1.bf16.msra.mxu0 %v205
    %234 = vmatprep.subr.bf16.mxu0 0
    %235 = vmatpush1.bf16.msra.mxu0 %v204
    %236 = vmatprep.subr.bf16.mxu0 0
    %237 = vmatpush2.bf16.msra.mxu0 0
    %238 = vmatprep.subr.bf16.mxu0 0
    %239 = vmatpush2.bf16.msra.mxu0 0
    %240 = vmatprep.subr.bf16.mxu0 0
    %241 = vmatpush2.bf16.msra.mxu0 0
    %242 = vmatprep.subr.bf16.mxu0 0
    %243 = vmatpush2.bf16.msra.mxu0 0
    %244 = vmatprep.subr.bf16.mxu0 0
    %245 = vmatpush2.bf16.msra.mxu0 0
    %246 = vmatprep.subr.bf16.mxu0 0
    %247 = vmatpush2.bf16.msra.mxu0 0
    %248 = vmatprep.subr.bf16.mxu0 0
    %249 = vmatpush2.bf16.msra.mxu0 0
    %250 = vmatprep.subr.bf16.mxu0 0
    %251 = vmatpush2.bf16.msra.mxu0 0
    %252 = vmatprep.mubr.bf16.mxu0 0
    %253 = vmatmul.mubr.bf16.gmra.mxu0 %v166
    %v254 = vpop.f32.mrf.mxu0
    %v255 = vadd.f32 %v171, %v254
    %v256 = vpop.f32.mrf.mxu0
    %v257 = vpop.f32.mrf.mxu0
    %v258 = vadd.f32 %v171, %v257
    %v259 = vpop.f32.mrf.mxu0
    %260 = vdwg.mxu0
    %v261 = vtanh.pop %v255
    %v262 = vtanh.pop %v258
    %v263 = vld [vmem:[%s0 + $0x8] sm:$0xf]
    %v264 = vunpack.c.l.bf16 %v263
    %v265 = vlaneseq
    %v266 = vand.u32 %v265, 127
    %vm267 = vcmp.lt.s32.totalorder %v266, 32
    %v268 = vsel %vm267, 1, 0
    %v269 = vcvt.s32.f32 %v268
    %vm270 = vcmp.ge.s32.totalorder %v266, 64
    %vm271 = vcmp.lt.s32.totalorder %v266, 96
    %vm272 = vmand %vm270, %vm271
    %v273 = vsel %vm272, 1, 0
    %v274 = vcvt.s32.f32 %v273
    %vm275 = vcmp.ge.s32.totalorder %v266, 96
    %v276 = vsel %vm275, 1, 0
    %v277 = vcvt.s32.f32 %v276
    %v278 = vmul.f32 %v261, %v269
    %v279 = vadd.f32 %v278, %v264
    %280 = vst [vmem:[#allocation2] sm:$0xff] %v279
    %v281 = vmul.f32 %v261, %v274
    %v282 = vmul.f32 %v262, %v277
    %v283 = vadd.f32 %v281, %v282
    %284 = vst [vmem:[#allocation2 + $0x8] sm:$0xff] %v283
    %v285 = vld [vmem:[#allocation2] sm:$0xff]
    %v286 = vld [vmem:[#allocation2 + $0x8] sm:$0xff]
    %s287 = scalar_lea.vmem [#allocation4], 128
    %v288 = vld [vmem:[%s287] sm:$0xf]
    %v289 = vld [vmem:[%s287 + $0x4] sm:$0xf]
    %v290 = vld [vmem:[%s287 + $0x8] sm:$0xf]
    %v291 = vld [vmem:[%s287 + $0xc] sm:$0xf]
    %v292 = vld [vmem:[%s287 + $0x10] sm:$0xf]
    %v293 = vld [vmem:[%s287 + $0x14] sm:$0xf]
    %v294 = vld [vmem:[%s287 + $0x18] sm:$0xf]
    %v295 = vld [vmem:[%s287 + $0x1c] sm:$0xf]
    %v296 = vld [vmem:[%s287 + $0x20] sm:$0xf]
    %v297 = vld [vmem:[%s287 + $0x24] sm:$0xf]
    %v298 = vld [vmem:[%s287 + $0x28] sm:$0xf]
    %v299 = vld [vmem:[%s287 + $0x2c] sm:$0xf]
    %v300 = vld [vmem:[%s287 + $0x30] sm:$0xf]
    %v301 = vld [vmem:[%s287 + $0x34] sm:$0xf]
    %v302 = vld [vmem:[%s287 + $0x38] sm:$0xf]
    %v303 = vld [vmem:[%s287 + $0x3c] sm:$0xf]
    %v304 = vpack.c.bf16 %v286, %v285
    %v321 = vunpack.c.l.b16 %v288
    %v322 = vunpack.c.l.b16 %v289
    %v323 = vunpack.c.l.b16 %v290
    %v324 = vunpack.c.l.b16 %v291
    %v325 = vunpack.c.l.b16 %v292
    %v326 = vunpack.c.l.b16 %v293
    %v327 = vunpack.c.l.b16 %v294
    %v328 = vunpack.c.l.b16 %v295
    %v329 = vunpack.c.l.b16 %v296
    %v330 = vunpack.c.l.b16 %v297
    %v331 = vunpack.c.l.b16 %v298
    %v332 = vunpack.c.l.b16 %v299
    %v333 = vunpack.c.l.b16 %v300
    %v334 = vunpack.c.l.b16 %v301
    %v335 = vunpack.c.l.b16 %v302
    %v336 = vunpack.c.l.b16 %v303
    %v337 = vpack.c.b16 %v322, %v321
    %v338 = vpack.c.b16 %v324, %v323
    %v339 = vpack.c.b16 %v326, %v325
    %v340 = vpack.c.b16 %v328, %v327
    %v341 = vpack.c.b16 %v330, %v329
    %v342 = vpack.c.b16 %v332, %v331
    %v343 = vpack.c.b16 %v334, %v333
    %v344 = vpack.c.b16 %v336, %v335
    %353 = vmatprep.subr.bf16.mxu0 0
    %354 = vmatpush1.bf16.msra.mxu0 %v344
    %355 = vmatprep.subr.bf16.mxu0 0
    %356 = vmatpush1.bf16.msra.mxu0 %v343
    %357 = vmatprep.subr.bf16.mxu0 0
    %358 = vmatpush1.bf16.msra.mxu0 %v342
    %359 = vmatprep.subr.bf16.mxu0 0
    %360 = vmatpush1.bf16.msra.mxu0 %v341
    %361 = vmatprep.subr.bf16.mxu0 0
    %362 = vmatpush1.bf16.msra.mxu0 %v340
    %363 = vmatprep.subr.bf16.mxu0 0
    %364 = vmatpush1.bf16.msra.mxu0 %v339
    %365 = vmatprep.subr.bf16.mxu0 0
    %366 = vmatpush1.bf16.msra.mxu0 %v338
    %367 = vmatprep.subr.bf16.mxu0 0
    %368 = vmatpush1.bf16.msra.mxu0 %v337
    %369 = vmatprep.subr.bf16.mxu0 0
    %370 = vmatpush2.bf16.msra.mxu0 0
    %371 = vmatprep.subr.bf16.mxu0 0
    %372 = vmatpush2.bf16.msra.mxu0 0
    %373 = vmatprep.subr.bf16.mxu0 0
    %374 = vmatpush2.bf16.msra.mxu0 0
    %375 = vmatprep.subr.bf16.mxu0 0
    %376 = vmatpush2.bf16.msra.mxu0 0
    %377 = vmatprep.subr.bf16.mxu0 0
    %378 = vmatpush2.bf16.msra.mxu0 0
    %379 = vmatprep.subr.bf16.mxu0 0
    %380 = vmatpush2.bf16.msra.mxu0 0
    %381 = vmatprep.subr.bf16.mxu0 0
    %382 = vmatpush2.bf16.msra.mxu0 0
    %383 = vmatprep.subr.bf16.mxu0 0
    %384 = vmatpush2.bf16.msra.mxu0 0
    %385 = vmatprep.mubr.bf16.mxu0 0
    %386 = vmatmul.mubr.bf16.gmra.mxu0 %v304
    %v387 = vpop.f32.mrf.mxu0
    %v388 = vadd.f32 0.0, %v387
    %v389 = vpop.f32.mrf.mxu0
    %v390 = vpop.f32.mrf.mxu0
    %v391 = vadd.f32 0.0, %v390
    %v392 = vpop.f32.mrf.mxu0
    %393 = vdwg.mxu0
    %v394 = vld [vmem:[%s2 + $0x2] sm:$0x1]
    %v395 = vlaneseq
    %v396 = vshrl.u32 %v395, 7
    %v397 = vsub.s32 0, %v396
    %v398 = vrot.slane %v394, %v397
    %v399 = vadd.f32 %v388, %v398
    %v400 = vtanh.pop %v399
    %401 = vst [vmem:[#allocation3] sm:$0xff] %v400
    %v402 = vld [vmem:[%s2 + $0x3] sm:$0x1]
    %v403 = vlaneseq
    %v404 = vshrl.u32 %v403, 7
    %v405 = vsub.s32 0, %v404
    %v406 = vrot.slane %v402, %v405
    %v407 = vadd.f32 %v391, %v406
    %v408 = vtanh.pop %v407
    %409 = vst [vmem:[#allocation3 + $0x8] sm:$0xff] %v408
    %v410 = vld [vmem:[#allocation3] sm:$0xff]
    %v411 = vld [vmem:[#allocation3 + $0x8] sm:$0xff]
    %s412 = scalar_lea.vmem [#allocation4], 192
    %v413 = vld [vmem:[%s412] sm:$0xf]
    %v414 = vld [vmem:[%s412 + $0x4] sm:$0xf]
    %v415 = vld [vmem:[%s412 + $0x8] sm:$0xf]
    %v416 = vld [vmem:[%s412 + $0xc] sm:$0xf]
    %v417 = vld [vmem:[%s412 + $0x10] sm:$0xf]
    %v418 = vld [vmem:[%s412 + $0x14] sm:$0xf]
    %v419 = vld [vmem:[%s412 + $0x18] sm:$0xf]
    %v420 = vld [vmem:[%s412 + $0x1c] sm:$0xf]
    %v421 = vld [vmem:[%s412 + $0x20] sm:$0xf]
    %v422 = vld [vmem:[%s412 + $0x24] sm:$0xf]
    %v423 = vld [vmem:[%s412 + $0x28] sm:$0xf]
    %v424 = vld [vmem:[%s412 + $0x2c] sm:$0xf]
    %v425 = vld [vmem:[%s412 + $0x30] sm:$0xf]
    %v426 = vld [vmem:[%s412 + $0x34] sm:$0xf]
    %v427 = vld [vmem:[%s412 + $0x38] sm:$0xf]
    %v428 = vld [vmem:[%s412 + $0x3c] sm:$0xf]
    %v429 = vpack.c.bf16 %v411, %v410
    %v446 = vunpack.c.l.b16 %v413
    %v447 = vunpack.c.l.b16 %v414
    %v448 = vunpack.c.l.b16 %v415
    %v449 = vunpack.c.l.b16 %v416
    %v450 = vunpack.c.l.b16 %v417
    %v451 = vunpack.c.l.b16 %v418
    %v452 = vunpack.c.l.b16 %v419
    %v453 = vunpack.c.l.b16 %v420
    %v454 = vunpack.c.l.b16 %v421
    %v455 = vunpack.c.l.b16 %v422
    %v456 = vunpack.c.l.b16 %v423
    %v457 = vunpack.c.l.b16 %v424
    %v458 = vunpack.c.l.b16 %v425
    %v459 = vunpack.c.l.b16 %v426
    %v460 = vunpack.c.l.b16 %v427
    %v461 = vunpack.c.l.b16 %v428
    %v462 = vpack.c.b16 %v447, %v446
    %v463 = vpack.c.b16 %v449, %v448
    %v464 = vpack.c.b16 %v451, %v450
    %v465 = vpack.c.b16 %v453, %v452
    %v466 = vpack.c.b16 %v455, %v454
    %v467 = vpack.c.b16 %v457, %v456
    %v468 = vpack.c.b16 %v459, %v458
    %v469 = vpack.c.b16 %v461, %v460
    %478 = vmatprep.subr.bf16.mxu0 0
    %479 = vmatpush1.bf16.msra.mxu0 %v469
    %480 = vmatprep.subr.bf16.mxu0 0
    %481 = vmatpush1.bf16.msra.mxu0 %v468
    %482 = vmatprep.subr.bf16.mxu0 0
    %483 = vmatpush1.bf16.msra.mxu0 %v467
    %484 = vmatprep.subr.bf16.mxu0 0
    %485 = vmatpush1.bf16.msra.mxu0 %v466
    %486 = vmatprep.subr.bf16.mxu0 0
    %487 = vmatpush1.bf16.msra.mxu0 %v465
    %488 = vmatprep.subr.bf16.mxu0 0
    %489 = vmatpush1.bf16.msra.mxu0 %v464
    %490 = vmatprep.subr.bf16.mxu0 0
    %491 = vmatpush1.bf16.msra.mxu0 %v463
    %492 = vmatprep.subr.bf16.mxu0 0
    %493 = vmatpush1.bf16.msra.mxu0 %v462
    %494 = vmatprep.subr.bf16.mxu0 0
    %495 = vmatpush2.bf16.msra.mxu0 0
    %496 = vmatprep.subr.bf16.mxu0 0
    %497 = vmatpush2.bf16.msra.mxu0 0
    %498 = vmatprep.subr.bf16.mxu0 0
    %499 = vmatpush2.bf16.msra.mxu0 0
    %500 = vmatprep.subr.bf16.mxu0 0
    %501 = vmatpush2.bf16.msra.mxu0 0
    %502 = vmatprep.subr.bf16.mxu0 0
    %503 = vmatpush2.bf16.msra.mxu0 0
    %504 = vmatprep.subr.bf16.mxu0 0
    %505 = vmatpush2.bf16.msra.mxu0 0
    %506 = vmatprep.subr.bf16.mxu0 0
    %507 = vmatpush2.bf16.msra.mxu0 0
    %508 = vmatprep.subr.bf16.mxu0 0
    %509 = vmatpush2.bf16.msra.mxu0 0
    %510 = vmatprep.mubr.bf16.mxu0 0
    %511 = vmatmul.mubr.bf16.gmra.mxu0 %v429
    %v512 = vpop.f32.mrf.mxu0
    %v513 = vadd.f32 0.0, %v512
    %v514 = vpop.f32.mrf.mxu0
    %v515 = vpop.f32.mrf.mxu0
    %v516 = vadd.f32 0.0, %v515
    %v517 = vpop.f32.mrf.mxu0
    %518 = vdwg.mxu0
    %v519 = vld [vmem:[%s2 + $0x4] sm:$0x1]
    %v520 = vlaneseq
    %v521 = vshrl.u32 %v520, 7
    %v522 = vsub.s32 0, %v521
    %v523 = vrot.slane %v519, %v522
    %v524 = vadd.f32 %v513, %v523
    %v525 = vld [vmem:[%s2 + $0x5] sm:$0x1]
    %v526 = vlaneseq
    %v527 = vshrl.u32 %v526, 7
    %v528 = vsub.s32 0, %v527
    %v529 = vrot.slane %v525, %v528
    %v530 = vadd.f32 %v516, %v529
    %v531 = vtanh.pop %v530
    %v532 = vsub.f32 %v262, %v524
    %v533 = vmul.f32 %v532, %v269
    %v534 = vmul.f32 %v533, %v533
    %535 = vadd.xlane.f32.xlu0 %v534
    %v536 = vpop.xlane.xlu0 %535
    %v537 = vmul.f32 %v536, 0.5
    %vm538 = vcmask 7168
    %v539 = vsel %vm538, %v537, 0.0
    %540 = vadd.xlane.f32.xlu0 %v539
    %v541 = vpop.xlane.xlu0 %540
    %v542 = vrot.slane %v541, 4
    %v543 = vadd.f32 %v541, %v542
    %v544 = vrot.slane %v543, 2
    %v545 = vadd.f32 %v543, %v544
    %v546 = vrot.slane %v545, 1
    %v547 = vadd.f32 %v545, %v546
    %s548 = vtos %v547
    %s549 = smul.f32 %s548, 0.125
    %v550 = vsub.f32 %v531, %v264
    %v551 = vmul.f32 %v550, %v550
    %552 = vadd.xlane.f32.xlu0 %v551
    %v553 = vpop.xlane.xlu0 %552
    %v554 = vrot.slane %v553, 4
    %v555 = vadd.f32 %v553, %v554
    %v556 = vrot.slane %v555, 2
    %v557 = vadd.f32 %v555, %v556
    %v558 = vrot.slane %v557, 1
    %v559 = vadd.f32 %v557, %v558
    %s560 = vtos %v559
    %s561 = smul.f32 %s560, 0.5
    %s562 = smul.f32 %s561, 0.125
    %s563 = smul.f32 %s562, 0.8
    %s564 = smul.f32 %s549, 0.2
    %s565 = sadd.f32 %s563, %s564
    %v566 = vmul.f32 %v537, 0.2
    %567 = vst [vmem:[%s3] sm:$0xff] %v566
    %vm568 = vcmp.eq.s32.totalorder %v266, 0
    %v569 = vstv %s565
    %v570 = vsel %vm568, %v569, 0.0
    %vm571 = vcmp.eq.s32.totalorder %v266, 1
    %v572 = vstv %s549
    %v573 = vsel %vm571, %v572, 0.0
    %v574 = vadd.f32 %v570, %v573
    %vm575 = vcmp.eq.s32.totalorder %v266, 2
    %v576 = vstv %s562
    %v577 = vsel %vm575, %v576, 0.0
    %v578 = vadd.f32 %v574, %v577
    %579 = vst [vmem:[%s3 + $0x8] sm:$0xff] %v578
    // Predicated region
    $region18: #{curiosity_forward.1} parent=1 // pred_check
      _
    $region19: #{curiosity_forward.1} parent=1 // pred_check_branch
      %581 = sbr.rel (0) target = $region21
    $region20: #{curiosity_forward.1} parent=1 // pred_region
      _
    $region21: #{curiosity_forward.1} parent=1 // pred_fallthru
      _
    // Predicated region
    $region22: #{curiosity_forward.1} parent=1 // pred_check
      _
    $region23: #{curiosity_forward.1} parent=1 // pred_check_branch
      %583 = sbr.rel (0) target = $region25
    $region24: #{curiosity_forward.1} parent=1 // pred_region
      _
    $region25: #{curiosity_forward.1} parent=1 // pred_fallthru
      _
    %584 = vsyncpa [#allocation5], 1

</llo_original>
